<compile_context>
chip_gen: v7x
topology: tpu7x:2x2x1
jax: 0.10.0
libtpu: 0.0.40
codegen_flags: <defaults>
</compile_context>

<pallas_src>
import functools

import jax
import jax.numpy as jnp
from jax import lax
from jax.experimental import pallas as pl
from jax.experimental.pallas import tpu as pltpu


def _round_up(x, m):
    return ((x + m - 1) // m) * m


# -----------------------------------------------------------------------------
# Fused (matmul + folded-BN affine + optional residual + ReLU) Pallas kernel
# -----------------------------------------------------------------------------
def _fused_matmul_kernel(*refs, relu, has_residual):
    if has_residual:
        x_ref, w_ref, s_ref, b_ref, r_ref, o_ref, acc_ref = refs
    else:
        x_ref, w_ref, s_ref, b_ref, o_ref, acc_ref = refs
        r_ref = None

    k = pl.program_id(1)

    @pl.when(k == 0)
    def _():
        acc_ref[...] = jnp.zeros_like(acc_ref)

    acc_ref[...] += jnp.dot(
        x_ref[...], w_ref[...], preferred_element_type=jnp.float32
    )

    @pl.when(k == pl.num_programs(1) - 1)
    def _():
        y = acc_ref[...] * s_ref[...] + b_ref[...]
        if has_residual:
            y = y + r_ref[...].astype(jnp.float32)
        if relu:
            y = jnp.maximum(y, 0.0)
        o_ref[...] = y.astype(o_ref.dtype)


def fused_matmul_bn_act(x, w, scale, bias, *, residual=None, relu=True,
                        out_dtype=None, tm=1024, tk=1024):
    """out = act((x @ w) * scale + bias [+ residual]), f32 accumulation.

    x: (M, K), w: (K, N), scale/bias: (N,), residual: (M, N) or None.
    """
    M, K = x.shape
    K2, N = w.shape
    assert K == K2
    out_dtype = out_dtype if out_dtype is not None else x.dtype

    # M tiling: 8-aligned sublane tiles, grid = cdiv(M, tm) via zero padding.
    tm = min(tm, _round_up(M, 8))
    Mp = _round_up(M, tm)

    # K tiling: lane axis of x -> 128-aligned tiles (or the full K in one block).
    nk = pl.cdiv(K, tk)
    if nk == 1:
        tk = K
        Kp = K
    else:
        tk = _round_up(pl.cdiv(K, nk), 128)
        Kp = nk * tk

    if Mp != M or Kp != K:
        x = jnp.pad(x, ((0, Mp - M), (0, Kp - K)))
    if Kp != K:
        w = jnp.pad(w, ((0, Kp - K), (0, 0)))

    scale2 = scale.reshape(1, N).astype(jnp.float32)
    bias2 = bias.reshape(1, N).astype(jnp.float32)

    in_specs = [
        pl.BlockSpec((tm, tk), lambda i, k: (i, k)),   # activation patches
        pl.BlockSpec((tk, N), lambda i, k: (k, 0)),    # weights
        pl.BlockSpec((1, N), lambda i, k: (0, 0)),     # folded BN scale (resident)
        pl.BlockSpec((1, N), lambda i, k: (0, 0)),     # folded BN bias  (resident)
    ]
    args = [x, w, scale2, bias2]
    if residual is not None:
        if Mp != M:
            residual = jnp.pad(residual, ((0, Mp - M), (0, 0)))
        in_specs.append(pl.BlockSpec((tm, N), lambda i, k: (i, 0)))
        args.append(residual)

    kernel = functools.partial(
        _fused_matmul_kernel, relu=relu, has_residual=residual is not None
    )

    out = pl.pallas_call(
        kernel,
        out_shape=jax.ShapeDtypeStruct((Mp, N), out_dtype),
        grid=(Mp // tm, Kp // tk),
        in_specs=in_specs,
        out_specs=pl.BlockSpec((tm, N), lambda i, k: (i, 0)),
        scratch_shapes=[pltpu.VMEM((tm, N), jnp.float32)],
        compiler_params=pltpu.CompilerParams(
            dimension_semantics=("parallel", "arbitrary"),
            vmem_limit_bytes=48 * 1024 * 1024,
        ),
    )(*args)

    if Mp != M:
        out = out[:M]
    return out


# -----------------------------------------------------------------------------
# Conv3d (+BN+ReLU+residual) via im2col + the fused Pallas matmul
# -----------------------------------------------------------------------------
def _extract_patches_3d(x, ksize, stride, padding):
    """im2col for 3-D conv.  x: (N, T, H, W, C) channels-last.

    Pure slicing / concatenation (layout plumbing only) — all FLOPs stay in the
    Pallas kernel.  Returns (patches (N*To*Ho*Wo, kt*kh*kw*C), (N, To, Ho, Wo)).
    """
    kt, kh, kw = ksize
    st, sh, sw = stride
    pt, ph, pw = padding
    if pt or ph or pw:
        x = jnp.pad(x, ((0, 0), (pt, pt), (ph, ph), (pw, pw), (0, 0)))
    N, Tp, Hp, Wp, C = x.shape
    To = (Tp - kt) // st + 1
    Ho = (Hp - kh) // sh + 1
    Wo = (Wp - kw) // sw + 1
    slabs = []
    for dt in range(kt):
        for dh in range(kh):
            for dw in range(kw):
                slabs.append(
                    x[:, dt:dt + (To - 1) * st + 1:st,
                         dh:dh + (Ho - 1) * sh + 1:sh,
                         dw:dw + (Wo - 1) * sw + 1:sw, :]
                )
    patches = jnp.concatenate(slabs, axis=-1) if len(slabs) > 1 else slabs[0]
    return patches.reshape(N * To * Ho * Wo, kt * kh * kw * C), (N, To, Ho, Wo)


def conv3d_bn_act(x, w, scale, bias, *, stride, padding, relu=True,
                  residual=None, compute_dtype=jnp.bfloat16, out_dtype=None):
    """x: (N, T, H, W, Cin) channels-last; w: (Cout, Cin, kt, kh, kw) torch layout."""
    cout, cin, kt, kh, kw = w.shape
    patches, (n, to, ho, wo) = _extract_patches_3d(
        x.astype(compute_dtype), (kt, kh, kw), stride, padding
    )
    # (Cout, Cin, kt, kh, kw) -> (kt, kh, kw, Cin, Cout) -> (K, Cout); matches the
    # (dt, dh, dw, ci) ordering produced by _extract_patches_3d.
    wmat = jnp.transpose(w, (2, 3, 4, 1, 0)).reshape(kt * kh * kw * cin, cout)
    wmat = wmat.astype(compute_dtype)
    res2d = residual.reshape(-1, cout) if residual is not None else None
    out2d = fused_matmul_bn_act(
        patches, wmat, scale, bias, residual=res2d, relu=relu,
        out_dtype=out_dtype if out_dtype is not None else compute_dtype,
    )
    return out2d.reshape(n, to, ho, wo, cout)


# -----------------------------------------------------------------------------
# Global average pool (AdaptiveAvgPool3d((1,1,1)) + flatten) as a Pallas kernel
# -----------------------------------------------------------------------------
def _global_avgpool_kernel(x_ref, o_ref):
    o_ref[...] = jnp.mean(
        x_ref[...].astype(jnp.float32), axis=1, keepdims=True
    ).astype(o_ref.dtype)


def global_avgpool3d(x, out_dtype=jnp.float32):
    """(N, T, H, W, C) -> (N, C)."""
    N, T, H, W, C = x.shape
    S = T * H * W
    x3 = x.reshape(N, S, C)
    out = pl.pallas_call(
        _global_avgpool_kernel,
        out_shape=jax.ShapeDtypeStruct((N, 1, C), out_dtype),
        grid=(N,),
        in_specs=[pl.BlockSpec((1, S, C), lambda i: (i, 0, 0))],
        out_specs=pl.BlockSpec((1, 1, C), lambda i: (i, 0, 0)),
        compiler_params=pltpu.CompilerParams(dimension_semantics=("parallel",)),
    )(x3)
    return out.reshape(N, C)


# -----------------------------------------------------------------------------
# R3D-18 backbone parameters (BatchNorm folded for inference) and forward pass
# -----------------------------------------------------------------------------
def _fold_bn(gamma, beta, mean, var, eps=1e-5):
    scale = gamma * lax.rsqrt(var + eps)
    return scale, beta - mean * scale


def _init_conv_bn(key, cin, cout, ksize):
    kw_, kg, kb, km, kv = jax.random.split(key, 5)
    kt, kh, kw = ksize
    fan_in = cin * kt * kh * kw
    w = jax.random.normal(kw_, (cout, cin, kt, kh, kw), jnp.float32)
    w = w * jnp.sqrt(2.0 / fan_in)
    gamma = 1.0 + 0.1 * jax.random.normal(kg, (cout,), jnp.float32)
    beta = 0.1 * jax.random.normal(kb, (cout,), jnp.float32)
    mean = 0.1 * jax.random.normal(km, (cout,), jnp.float32)
    var = jax.random.uniform(kv, (cout,), jnp.float32, 0.5, 1.5)
    scale, bias = _fold_bn(gamma, beta, mean, var)
    return {"w": w, "scale": scale, "bias": bias}


def init_r3d18_params(key):
    keys = jax.random.split(key, 32)
    ki = iter(keys)
    params = {"stem": _init_conv_bn(next(ki), 3, 64, (3, 7, 7))}
    stage_cfg = [(64, 64), (64, 128), (128, 256), (256, 512)]
    layers = []
    for stage_idx, (cin, cout) in enumerate(stage_cfg):
        blocks = []
        for b in range(2):
            blk_cin = cin if b == 0 else cout
            stride_first = 2 if (stage_idx > 0 and b == 0) else 1
            blk = {
                "conv1": _init_conv_bn(next(ki), blk_cin, cout, (3, 3, 3)),
                "conv2": _init_conv_bn(next(ki), cout, cout, (3, 3, 3)),
            }
            if stride_first != 1 or blk_cin != cout:
                blk["downsample"] = _init_conv_bn(next(ki), blk_cin, cout, (1, 1, 1))
            blocks.append(blk)
        layers.append(blocks)
    params["layers"] = layers
    return params


def resnet18_forward(x, params, *, compute_dtype=jnp.bfloat16):
    """Pallas equivalent of ResNet18.forward.

    x: (bs, nc, ch, l, h, w) float32.  returns (bs*nc, 512) float32 features.
    """
    bs, nc, ch, l, h, w = x.shape
    x = x.reshape(bs * nc, ch, l, h, w)
    # NCDHW -> NDHWC so channels map onto the TPU lane axis.
    x = jnp.transpose(x, (0, 2, 3, 4, 1))

    stem = params["stem"]
    x = conv3d_bn_act(x, stem["w"], stem["scale"], stem["bias"],
                      stride=(1, 2, 2), padding=(1, 3, 3), relu=True,
                      compute_dtype=compute_dtype)

    for stage_idx, blocks in enumerate(params["layers"]):
        for blk_idx, blk in enumerate(blocks):
            s = 2 if (stage_idx > 0 and blk_idx == 0) else 1
            stride = (s, s, s)
            identity = x
            c1 = blk["conv1"]
            out = conv3d_bn_act(x, c1["w"], c1["scale"], c1["bias"],
                                stride=stride, padding=(1, 1, 1), relu=True,
                                compute_dtype=compute_dtype)
            if "downsample" in blk:
                ds = blk["downsample"]
                identity = conv3d_bn_act(x, ds["w"], ds["scale"], ds["bias"],
                                         stride=stride, padding=(0, 0, 0),
                                         relu=False, compute_dtype=compute_dtype)
            c2 = blk["conv2"]
            x = conv3d_bn_act(out, c2["w"], c2["scale"], c2["bias"],
                              stride=(1, 1, 1), padding=(1, 1, 1), relu=True,
                              residual=identity, compute_dtype=compute_dtype)

    return global_avgpool3d(x, out_dtype=jnp.float32)   # (bs*nc, 512)


if __name__ == "__main__":
    key = jax.random.PRNGKey(0)
    k_check, k_conv, k_param, k_x = jax.random.split(key, 4)

    # 1) Unit check: fused matmul kernel (tiled, padded M/K, residual+ReLU path).
    kc = jax.random.split(k_check, 5)
    xm = jax.random.normal(kc[0], (96, 200), jnp.float32)
    wm = jax.random.normal(kc[1], (200, 128), jnp.float32) * 0.05
    sm = jax.random.uniform(kc[2], (128,), jnp.float32, 0.5, 1.5)
    bm = jax.random.normal(kc[3], (128,), jnp.float32) * 0.1
    rm = jax.random.normal(kc[4], (96, 128), jnp.float32)
    got = fused_matmul_bn_act(xm, wm, sm, bm, residual=rm, relu=True,
                              out_dtype=jnp.float32, tm=64, tk=128)
    want = jnp.maximum(xm @ wm * sm + bm + rm, 0.0)
    assert jnp.allclose(got, want, atol=5e-2, rtol=5e-2), "fused matmul mismatch"

    # 2) Unit check: one strided Conv3d+BN+ReLU against lax.conv_general_dilated.
    kcv = jax.random.split(k_conv, 4)
    xc = jax.random.normal(kcv[0], (2, 5, 7, 7, 6), jnp.float32)
    wc = jax.random.normal(kcv[1], (8, 6, 3, 3, 3), jnp.float32) * 0.1
    sc = jax.random.uniform(kcv[2], (8,), jnp.float32, 0.5, 1.5)
    bc = jax.random.normal(kcv[3], (8,), jnp.float32) * 0.1
    got_c = conv3d_bn_act(xc, wc, sc, bc, stride=(1, 2, 2), padding=(1, 1, 1),
                          relu=True, compute_dtype=jnp.float32,
                          out_dtype=jnp.float32)
    ref_c = lax.conv_general_dilated(
        xc, jnp.transpose(wc, (2, 3, 4, 1, 0)),
        window_strides=(1, 2, 2), padding=[(1, 1), (1, 1), (1, 1)],
        dimension_numbers=("NDHWC", "DHWIO", "NDHWC"))
    ref_c = jnp.maximum(ref_c * sc + bc, 0.0)
    assert jnp.allclose(got_c, ref_c, atol=5e-2, rtol=5e-2), "conv3d mismatch"

    # 3) Full ResNet18 (video backbone) forward at small shapes.
    params = init_r3d18_params(k_param)
    bs, nc, ch, l, h, w = 1, 2, 3, 4, 32, 32
    x = jax.random.normal(k_x, (bs, nc, ch, l, h, w), jnp.float32)

    feats = jax.jit(resnet18_forward)(x, params)
    feats = jax.block_until_ready(feats)
    assert feats.shape == (bs * nc, 512)
    assert bool(jnp.all(jnp.isfinite(feats)))

    print("KERNEL_OK")
</pallas_src>

<mosaic_0001>
module attributes {stable_mosaic.version = 11 : i64} {
  func.func @_fused_matmul_kernel(%arg0: i32, %arg1: i32, %arg2: memref<64x128xf32, #tpu.memory_space<vmem>>, %arg3: memref<128x128xf32, #tpu.memory_space<vmem>>, %arg4: memref<1x128xf32, #tpu.memory_space<vmem>>, %arg5: memref<1x128xf32, #tpu.memory_space<vmem>>, %arg6: memref<64x128xf32, #tpu.memory_space<vmem>>, %arg7: memref<64x128xf32, #tpu.memory_space<vmem>>, %arg8: memref<64x128xf32, #tpu.memory_space<vmem>>) attributes {dimension_semantics = [#tpu.dimension_semantics<parallel>, #tpu.dimension_semantics<arbitrary>], iteration_bounds = array<i64: 2, 2>, scalar_prefetch = 0 : i64, scratch_operands = 1 : i64, tpu.core_type = #tpu.core_type<tc>, window_params = [{transform_indices = @transform_0, window_bounds = array<i64: 64, 128>}, {transform_indices = @transform_1, window_bounds = array<i64: 128, 128>}, {pipeline_mode = #tpu.pipeline_mode<synchronous>, transform_indices = @transform_2, window_bounds = array<i64: 1, 128>}, {pipeline_mode = #tpu.pipeline_mode<synchronous>, transform_indices = @transform_3, window_bounds = array<i64: 1, 128>}, {transform_indices = @transform_4, window_bounds = array<i64: 64, 128>}, {transform_indices = @transform_5, window_bounds = array<i64: 64, 128>}]} {
    %c0_i32 = arith.constant 0 : i32
    %0 = arith.cmpi eq, %arg1, %c0_i32 : i32
    %1 = arith.extui %0 : i1 to i32
    %c0_i32_0 = arith.constant 0 : i32
    %2 = arith.cmpi ne, %1, %c0_i32_0 : i32
    scf.if %2 {
      %cst_9 = arith.constant 0.000000e+00 : f32
      %12 = vector.broadcast %cst_9 : f32 to vector<64x128xf32>
      %c0_10 = arith.constant 0 : index
      %c0_11 = arith.constant 0 : index
      %13 = vector.load %arg8[%c0_10, %c0_11] : memref<64x128xf32, #tpu.memory_space<vmem>>, vector<64x128xf32>
      tpu.vector_store %arg8[%c0_10, %c0_11], %12 {strides = array<i32>} : memref<64x128xf32, #tpu.memory_space<vmem>>, vector<64x128xf32>,
    } else {
    }
    %c0 = arith.constant 0 : index
    %c0_1 = arith.constant 0 : index
    %3 = vector.load %arg8[%c0, %c0_1] : memref<64x128xf32, #tpu.memory_space<vmem>>, vector<64x128xf32>
    %c0_2 = arith.constant 0 : index
    %c0_3 = arith.constant 0 : index
    %4 = vector.load %arg2[%c0_2, %c0_3] : memref<64x128xf32, #tpu.memory_space<vmem>>, vector<64x128xf32>
    %c0_4 = arith.constant 0 : index
    %c0_5 = arith.constant 0 : index
    %5 = vector.load %arg3[%c0_4, %c0_5] : memref<128x128xf32, #tpu.memory_space<vmem>>, vector<128x128xf32>
    %cst = arith.constant dense<0.000000e+00> : vector<64x128xf32>
    %6 = tpu.matmul %4, %5, %cst {dimension_numbers = #tpu.dot_dimension_numbers<[1], [0], [0], [1], [0, 0, 1, 1], [], []>} : vector<64x128xf32>, vector<128x128xf32>, vector<64x128xf32> -> vector<64x128xf32>
    %7 = arith.addf %3, %6 : vector<64x128xf32>
    %c0_6 = arith.constant 0 : index
    %c0_7 = arith.constant 0 : index
    %8 = vector.load %arg8[%c0_6, %c0_7] : memref<64x128xf32, #tpu.memory_space<vmem>>, vector<64x128xf32>
    tpu.vector_store %arg8[%c0_6, %c0_7], %7 {strides = array<i32>} : memref<64x128xf32, #tpu.memory_space<vmem>>, vector<64x128xf32>,
    %c1_i32 = arith.constant 1 : i32
    %9 = arith.cmpi eq, %arg1, %c1_i32 : i32
    %10 = arith.extui %9 : i1 to i32
    %c0_i32_8 = arith.constant 0 : i32
    %11 = arith.cmpi ne, %10, %c0_i32_8 : i32
    scf.if %11 {
      %c0_9 = arith.constant 0 : index
      %c0_10 = arith.constant 0 : index
      %12 = vector.load %arg8[%c0_9, %c0_10] : memref<64x128xf32, #tpu.memory_space<vmem>>, vector<64x128xf32>
      %c0_11 = arith.constant 0 : index
      %c0_12 = arith.constant 0 : index
      %13 = vector.load %arg4[%c0_11, %c0_12] : memref<1x128xf32, #tpu.memory_space<vmem>>, vector<1x128xf32>
      %14 = vector.broadcast %13 : vector<1x128xf32> to vector<64x128xf32>
      %15 = arith.mulf %12, %14 : vector<64x128xf32>
      %c0_13 = arith.constant 0 : index
      %c0_14 = arith.constant 0 : index
      %16 = vector.load %arg5[%c0_13, %c0_14] : memref<1x128xf32, #tpu.memory_space<vmem>>, vector<1x128xf32>
      %17 = vector.broadcast %16 : vector<1x128xf32> to vector<64x128xf32>
      %18 = arith.addf %15, %17 : vector<64x128xf32>
      %c0_15 = arith.constant 0 : index
      %c0_16 = arith.constant 0 : index
      %19 = vector.load %arg6[%c0_15, %c0_16] : memref<64x128xf32, #tpu.memory_space<vmem>>, vector<64x128xf32>
      %20 = arith.addf %18, %19 : vector<64x128xf32>
      %cst_17 = arith.constant 0.000000e+00 : f32
      %21 = vector.broadcast %cst_17 : f32 to vector<64x128xf32>
      %22 = arith.maximumf %20, %21 : vector<64x128xf32>
      %c0_18 = arith.constant 0 : index
      %c0_19 = arith.constant 0 : index
      %23 = vector.load %arg7[%c0_18, %c0_19] : memref<64x128xf32, #tpu.memory_space<vmem>>, vector<64x128xf32>
      tpu.vector_store %arg7[%c0_18, %c0_19], %22 {strides = array<i32>} : memref<64x128xf32, #tpu.memory_space<vmem>>, vector<64x128xf32>,
    } else {
    }
    return
  }
  func.func @transform_0(%arg0: i32, %arg1: i32) -> (i32, i32) {
    %c0_i32 = arith.constant 0 : i32
    return %arg0, %arg1 : i32, i32
  }
  func.func @transform_1(%arg0: i32, %arg1: i32) -> (i32, i32) {
    %c0_i32 = arith.constant 0 : i32
    %c0_i32_0 = arith.constant 0 : i32
    return %arg1, %c0_i32 : i32, i32
  }
  func.func @transform_2(%arg0: i32, %arg1: i32) -> (i32, i32) {
    %c0_i32 = arith.constant 0 : i32
    %c0_i32_0 = arith.constant 0 : i32
    %c0_i32_1 = arith.constant 0 : i32
    return %c0_i32, %c0_i32_0 : i32, i32
  }
  func.func @transform_3(%arg0: i32, %arg1: i32) -> (i32, i32) {
    %c0_i32 = arith.constant 0 : i32
    %c0_i32_0 = arith.constant 0 : i32
    %c0_i32_1 = arith.constant 0 : i32
    return %c0_i32, %c0_i32_0 : i32, i32
  }
  func.func @transform_4(%arg0: i32, %arg1: i32) -> (i32, i32) {
    %c0_i32 = arith.constant 0 : i32
    %c0_i32_0 = arith.constant 0 : i32
    return %arg0, %c0_i32 : i32, i32
  }
  func.func @transform_5(%arg0: i32, %arg1: i32) -> (i32, i32) {
    %c0_i32 = arith.constant 0 : i32
    %c0_i32_0 = arith.constant 0 : i32
    return %arg0, %c0_i32 : i32, i32
  }
}

</mosaic_0001>

<llo_original>
// kernel: tpu_custom_call.1
$region0: #{tpu_custom_call.1}
  #allocation0 [shape = 'u32[]', space=smem, size = 0x4, offset = 0x4, fixed_abs, tag = 'smem constant byte address 0x4 - core index']
  #allocation1 [shape = 'u32[144,128]{1,0:T(1,128)}', space=vmem, size = 0x12000, scoped, tag = 'internal scratch']
  #allocation2 [shape = 'f32[64,128]{1,0:T(8,128)}', space=vmem, size = 0x8000, scoped, tag = 'scratch operand']
  %s0 = inlined_call_operand.hbm [shape: f32[128,256], index: 0, kind: input, shape index: {}]
  %s1 = inlined_call_operand.hbm [shape: f32[256,128], index: 1, kind: input, shape index: {}]
  %s2 = inlined_call_operand.vmem [shape: f32[1,128], index: 2, kind: input, shape index: {}]
  %s3 = inlined_call_operand.vmem [shape: f32[1,128], index: 3, kind: input, shape index: {}]
  %s4 = inlined_call_operand.hbm [shape: f32[128,128], index: 4, kind: input, shape index: {}]
  %s5 = inlined_call_operand.hbm [shape: f32[128,128], index: 5, kind: output, shape index: {}]
  %s6 = sld [smem:[#allocation0]]
  $region73: #{tpu_custom_call.1} parent=0
    _
  %s8 = ssub.s32 1, %s6
  %s9 = scalar_select 0, %s8, %s6
  $region1: #{tpu_custom_call.1} parent=0
    #allocation3 [shape = 'u8[65536]{0}', space=vmem, size = 0x10000, scoped, tag = 'input window, operand 0']
    #allocation4 [shape = 's32[2]{0}', space=sflag, size = 0x8, scoped, tag = 'scoped memory for tpu_custom_call.1']
    #allocation5 [shape = 's32[2]{0}', space=sflag, size = 0x8, scoped, tag = 'scoped memory for tpu_custom_call.1']
    #allocation6 [shape = 'u8[131072]{0}', space=vmem, size = 0x20000, scoped, tag = 'input window, operand 1']
    #allocation7 [shape = 's32[2]{0}', space=sflag, size = 0x8, scoped, tag = 'scoped memory for tpu_custom_call.1']
    #allocation8 [shape = 'u8[65536]{0}', space=vmem, size = 0x10000, scoped, tag = 'input window, operand 4']
    #allocation9 [shape = 'u8[65536]{0}', space=vmem, size = 0x10000, scoped, tag = 'output window, operand 0']
    %10 = vsyncpa [#allocation4], 0
    %s11 = scalar_lea.sflag [#allocation4], 1
    %12 = vsyncpa %s11, 0
    %13 = vsyncpa [#allocation7], 0
    %s14 = scalar_lea.sflag [#allocation7], 1
    %15 = vsyncpa %s14, 0
    %16 = vsyncpa [#allocation5], 0
    %s17 = scalar_lea.sflag [#allocation5], 1
    %18 = vsyncpa %s17, 0
    loop: start=0, step=1, limit=6
    $region2: #{tpu_custom_call.1} parent=1 // loop_pre_header
      _
    $region3: #{tpu_custom_call.1} parent=1 // loop_header
      %s20 = sphi 0, %s24
      %p21 = scmp.ge.s32.totalorder %s20, 6
      %s27 = sphi 0, %s39
      %s28 = sphi 0, %s35
      %s29 = sphi 0, %s27
      %s30 = sphi 0, %s28
      %s31 = sphi 0, %s29
      %s32 = sphi 0, %s30
      %s44 = sphi 0, %s46
      %s47 = sphi 0, %s44
      %s48 = sphi 0, %s47
      %s64 = sphi 0, %s48
      %s70 = sphi 0, %s72
      %s73 = sphi 0, %s70
      %s74 = sphi 0, %s73
      %s90 = sphi 0, %s74
      %s94 = sphi 0, %s94
      %s96 = sphi 0, %s94
      %s97 = sphi 0, %s96
      %s111 = sphi 0, %s97
      %s115 = sphi 0, %s115
      %s117 = sphi 0, %s115
      %s118 = sphi 0, %s117
      %s132 = sphi 0, %s118
      %s138 = sphi 0, %s140
      %s141 = sphi 0, %s138
      %s142 = sphi 0, %s141
      %s158 = sphi 0, %s142
      %s164 = sphi 0, %s166
      %s167 = sphi 0, %s164
      %s168 = sphi 0, %s167
      %s184 = sphi 0, %s168
    $region4: #{tpu_custom_call.1} parent=1 // loop_header_branch
      %23 = sbr.rel (%p21) target = $region8
    $region5: #{tpu_custom_call.1} parent=1 // loop_body
      %s25 = ssub.s32 %s20, 1
      %s26 = ssub.s32 %s20, 2
      %s33 = sadd.s32 1, %s28
      %p34 = scmp.ge.s32.totalorder %s33, 2
      %s35 = scalar_select %p34, 0, %s33
      %s36 = sadd.s32 1, %s27
      %s37 = scalar_select %p34, %s36, %s27
      %p38 = scmp.ge.s32.totalorder %s37, 2
      %s39 = scalar_select %p38, 0, %s37
      %s40 = ssub.s32 %s27, %s39
      %s41 = ssub.s32 %s28, %s35
      %s42 = sor.u32 %s40, %s41
      %p43 = scmp.eq.s32.totalorder %s42, 0
      %s45 = sadd.s32 %s44, 1
      %s46 = scalar_select %p43, %s44, %s45
      %p49 = pneg %p43
      %p50 = scmp.eq.s32.totalorder %s20, 3
      %p51 = por %p49, %p50
      %p52 = scmp.ne.s32.totalorder %s44, %s47
      %p53 = scmp.eq.s32.totalorder %s20, 0
      %p54 = por %p52, %p53
      %p55 = scmp.ne.s32.totalorder %s44, %s47
      %p56 = scmp.eq.s32.totalorder %s25, 3
      %p57 = por %p55, %p56
      %p58 = scmp.ne.s32.totalorder %s47, %s48
      %p59 = scmp.eq.s32.totalorder %s25, 0
      %p60 = por %p58, %p59
      %p61 = scmp.ne.s32.totalorder %s47, %s48
      %p62 = scmp.eq.s32.totalorder %s26, 3
      %p63 = por %p61, %p62
      %p65 = scmp.ne.s32.totalorder %s48, %s64
      %p66 = scmp.eq.s32.totalorder %s26, 0
      %p67 = por %p65, %p66
      %s68 = ssub.s32 %s28, %s35
      %p69 = scmp.eq.s32.totalorder %s68, 0
      %s71 = sadd.s32 %s70, 1
      %s72 = scalar_select %p69, %s70, %s71
      %p75 = pneg %p69
      %p76 = scmp.eq.s32.totalorder %s20, 3
      %p77 = por %p75, %p76
      %p78 = scmp.ne.s32.totalorder %s70, %s73
      %p79 = scmp.eq.s32.totalorder %s20, 0
      %p80 = por %p78, %p79
      %p81 = scmp.ne.s32.totalorder %s70, %s73
      %p82 = scmp.eq.s32.totalorder %s25, 3
      %p83 = por %p81, %p82
      %p84 = scmp.ne.s32.totalorder %s73, %s74
      %p85 = scmp.eq.s32.totalorder %s25, 0
      %p86 = por %p84, %p85
      %p87 = scmp.ne.s32.totalorder %s73, %s74
      %p88 = scmp.eq.s32.totalorder %s26, 3
      %p89 = por %p87, %p88
      %p91 = scmp.ne.s32.totalorder %s74, %s90
      %p92 = scmp.eq.s32.totalorder %s26, 0
      %p93 = por %p91, %p92
      %s95 = sadd.s32 %s94, 1
      %p98 = scmp.eq.s32.totalorder %s20, 3
      %p99 = scmp.ne.s32.totalorder %s94, %s96
      %p100 = scmp.eq.s32.totalorder %s20, 0
      %p101 = por %p99, %p100
      %p102 = scmp.ne.s32.totalorder %s94, %s96
      %p103 = scmp.eq.s32.totalorder %s25, 3
      %p104 = por %p102, %p103
      %p105 = scmp.ne.s32.totalorder %s96, %s97
      %p106 = scmp.eq.s32.totalorder %s25, 0
      %p107 = por %p105, %p106
      %p108 = scmp.ne.s32.totalorder %s96, %s97
      %p109 = scmp.eq.s32.totalorder %s26, 3
      %p110 = por %p108, %p109
      %p112 = scmp.ne.s32.totalorder %s97, %s111
      %p113 = scmp.eq.s32.totalorder %s26, 0
      %p114 = por %p112, %p113
      %s116 = sadd.s32 %s115, 1
      %p119 = scmp.eq.s32.totalorder %s20, 3
      %p120 = scmp.ne.s32.totalorder %s115, %s117
      %p121 = scmp.eq.s32.totalorder %s20, 0
      %p122 = por %p120, %p121
      %p123 = scmp.ne.s32.totalorder %s115, %s117
      %p124 = scmp.eq.s32.totalorder %s25, 3
      %p125 = por %p123, %p124
      %p126 = scmp.ne.s32.totalorder %s117, %s118
      %p127 = scmp.eq.s32.totalorder %s25, 0
      %p128 = por %p126, %p127
      %p129 = scmp.ne.s32.totalorder %s117, %s118
      %p130 = scmp.eq.s32.totalorder %s26, 3
      %p131 = por %p129, %p130
      %p133 = scmp.ne.s32.totalorder %s118, %s132
      %p134 = scmp.eq.s32.totalorder %s26, 0
      %p135 = por %p133, %p134
      %s136 = ssub.s32 %s27, %s39
      %p137 = scmp.eq.s32.totalorder %s136, 0
      %s139 = sadd.s32 %s138, 1
      %s140 = scalar_select %p137, %s138, %s139
      %p143 = pneg %p137
      %p144 = scmp.eq.s32.totalorder %s20, 3
      %p145 = por %p143, %p144
      %p146 = scmp.ne.s32.totalorder %s138, %s141
      %p147 = scmp.eq.s32.totalorder %s20, 0
      %p148 = por %p146, %p147
      %p149 = scmp.ne.s32.totalorder %s138, %s141
      %p150 = scmp.eq.s32.totalorder %s25, 3
      %p151 = por %p149, %p150
      %p152 = scmp.ne.s32.totalorder %s141, %s142
      %p153 = scmp.eq.s32.totalorder %s25, 0
      %p154 = por %p152, %p153
      %p155 = scmp.ne.s32.totalorder %s141, %s142
      %p156 = scmp.eq.s32.totalorder %s26, 3
      %p157 = por %p155, %p156
      %p159 = scmp.ne.s32.totalorder %s142, %s158
      %p160 = scmp.eq.s32.totalorder %s26, 0
      %p161 = por %p159, %p160
      %s162 = ssub.s32 %s27, %s39
      %p163 = scmp.eq.s32.totalorder %s162, 0
      %s165 = sadd.s32 %s164, 1
      %s166 = scalar_select %p163, %s164, %s165
      %p169 = pneg %p163
      %p170 = scmp.eq.s32.totalorder %s20, 3
      %p171 = por %p169, %p170
      %p172 = scmp.ne.s32.totalorder %s164, %s167
      %p173 = scmp.eq.s32.totalorder %s20, 0
      %p174 = por %p172, %p173
      %p175 = scmp.ne.s32.totalorder %s164, %s167
      %p176 = scmp.eq.s32.totalorder %s25, 3
      %p177 = por %p175, %p176
      %p178 = scmp.ne.s32.totalorder %s167, %s168
      %p179 = scmp.eq.s32.totalorder %s25, 0
      %p180 = por %p178, %p179
      %p181 = scmp.ne.s32.totalorder %s167, %s168
      %p182 = scmp.eq.s32.totalorder %s26, 3
      %p183 = por %p181, %p182
      %p185 = scmp.ne.s32.totalorder %s168, %s184
      %p186 = scmp.eq.s32.totalorder %s26, 0
      %p187 = por %p185, %p186
      %p188 = scmp.le.s32.totalorder 1, %s20
      %p189 = scmp.lt.s32.totalorder %s20, 5
      %p190 = pnand %p188, %p189
      %p191 = pneg %p190
      // Predicated region
      $region9: #{tpu_custom_call.1} parent=5 // pred_check
        _
      $region10: #{tpu_custom_call.1} parent=5 // pred_check_branch
        %193 = sbr.rel (%p190) target = $region12
      $region11: #{tpu_custom_call.1} parent=5 // pred_region
        %s194 = ssub.s32 %s20, 1
        // Predicated region
        $region13: #{tpu_custom_call.1} parent=11 // pred_check
          %p195 = pneg %p107
        $region14: #{tpu_custom_call.1} parent=11 // pred_check_branch
          %197 = sbr.rel (%p195) target = $region16
        $region15: #{tpu_custom_call.1} parent=11 // pred_region
          _
        $region16: #{tpu_custom_call.1} parent=11 // pred_fallthru
          _
        // Predicated region
        $region17: #{tpu_custom_call.1} parent=11 // pred_check
          %p198 = pneg %p128
        $region18: #{tpu_custom_call.1} parent=11 // pred_check_branch
          %200 = sbr.rel (%p198) target = $region20
        $region19: #{tpu_custom_call.1} parent=11 // pred_region
          _
        $region20: #{tpu_custom_call.1} parent=11 // pred_fallthru
          _
      $region12: #{tpu_custom_call.1} parent=5 // pred_fallthru
        _
      %p201 = scmp.lt.s32.totalorder %s20, 4
      // Predicated region
      $region21: #{tpu_custom_call.1} parent=5 // pred_check
        %p202 = pneg %p201
      $region22: #{tpu_custom_call.1} parent=5 // pred_check_branch
        %204 = sbr.rel (%p202) target = $region24
      $region23: #{tpu_custom_call.1} parent=5 // pred_region
        // Predicated region
        $region25: #{tpu_custom_call.1} parent=23 // pred_check
          %p205 = pneg %p54
        $region26: #{tpu_custom_call.1} parent=23 // pred_check_branch
          %207 = sbr.rel (%p205) target = $region28
        $region27: #{tpu_custom_call.1} parent=23 // pred_region
          %s208 = sand.u32 %s44, 1
          %s209 = scalar_lea.sflag [#allocation4], %s208
          %s210 = sand.u32 %s44, 1
          %s211 = smul.addr %s210, 64
          %s212 = scalar_lea.vmem [#allocation3], %s211
          %s213 = smul.u32 8, %s27
          %s215 = ssub.s32 1024, 1024
          %216 = vsyncadd %s209, %s215
          %s217 = smul.addr %s213, 2
          %s218 = sadd.s32 %s28, %s217
          %s219 = smul.addr %s218, 128
          %s220 = scalar_lea.hbm %s0, %s219
          %s221 = sshll.u32 %s212, 4
          %s222 = int_to_ptr.vmem [resolvable:$true] %s221
          %227 = dma.hbm_to_vmem [thread:$0]  %s220, 1024, %s222, %s209, 256, 128, 8
        $region28: #{tpu_custom_call.1} parent=23 // pred_fallthru
          _
        // Predicated region
        $region29: #{tpu_custom_call.1} parent=23 // pred_check
          %p228 = pneg %p80
        $region30: #{tpu_custom_call.1} parent=23 // pred_check_branch
          %230 = sbr.rel (%p228) target = $region32
        $region31: #{tpu_custom_call.1} parent=23 // pred_region
          %s231 = sand.u32 %s20, 1
          %s232 = scalar_lea.sflag [#allocation7], %s231
          %s233 = sand.u32 %s70, 1
          %s234 = smul.addr %s233, 128
          %s235 = scalar_lea.vmem [#allocation6], %s234
          %s236 = smul.u32 16, %s28
          %s238 = ssub.s32 2048, 2048
          %239 = vsyncadd %s232, %s238
          %s240 = smul.addr %s236, 128
          %s241 = scalar_lea.hbm %s1, %s240
          %s242 = sshll.u32 %s235, 4
          %s243 = int_to_ptr.vmem [resolvable:$true] %s242
          %248 = dma.hbm_to_vmem [thread:$0]  %s241, 2048, %s243, %s232, 128, 128, 8
        $region32: #{tpu_custom_call.1} parent=23 // pred_fallthru
          _
        // Predicated region
        $region33: #{tpu_custom_call.1} parent=23 // pred_check
          %p249 = pneg %p148
        $region34: #{tpu_custom_call.1} parent=23 // pred_check_branch
          %251 = sbr.rel (%p249) target = $region36
        $region35: #{tpu_custom_call.1} parent=23 // pred_region
          %s252 = sand.u32 %s20, 1
          %s253 = scalar_lea.sflag [#allocation7], %s252
          %s254 = sand.u32 %s138, 1
          %s255 = smul.addr %s254, 64
          %s256 = scalar_lea.vmem [#allocation8], %s255
          %s257 = smul.u32 8, %s27
          %s259 = ssub.s32 1024, 1024
          %260 = vsyncadd %s253, %s259
          %s261 = smul.addr %s257, 128
          %s262 = scalar_lea.hbm %s4, %s261
          %s263 = sshll.u32 %s256, 4
          %s264 = int_to_ptr.vmem [resolvable:$true] %s263
          %269 = dma.hbm_to_vmem [thread:$0]  %s262, 1024, %s264, %s253, 128, 128, 8
        $region36: #{tpu_custom_call.1} parent=23 // pred_fallthru
          _
      $region24: #{tpu_custom_call.1} parent=5 // pred_fallthru
        _
      %p270 = scmp.le.s32.totalorder 1, %s20
      %p271 = scmp.lt.s32.totalorder %s20, 5
      %p272 = pnand %p270, %p271
      %p273 = pneg %p272
      // Predicated region
      $region37: #{tpu_custom_call.1} parent=5 // pred_check
        _
      $region38: #{tpu_custom_call.1} parent=5 // pred_check_branch
        %275 = sbr.rel (%p272) target = $region40
      $region39: #{tpu_custom_call.1} parent=5 // pred_region
        %s276 = ssub.s32 %s20, 1
        %s277 = sand.u32 %s47, 1
        %s278 = scalar_lea.sflag [#allocation4], %s277
        %s279 = sand.u32 %s47, 1
        %s280 = smul.addr %s279, 64
        %s281 = scalar_lea.vmem [#allocation3], %s280
        // Predicated region
        $region41: #{tpu_custom_call.1} parent=39 // pred_check
          %p282 = pneg %p60
        $region42: #{tpu_custom_call.1} parent=39 // pred_check_branch
          %284 = sbr.rel (%p282) target = $region44
        $region43: #{tpu_custom_call.1} parent=39 // pred_region
          %285 = dma.done %s278, 1024
        $region44: #{tpu_custom_call.1} parent=39 // pred_fallthru
          _
        %s286 = sand.u32 %s25, 1
        %s287 = scalar_lea.sflag [#allocation7], %s286
        %s288 = sand.u32 %s73, 1
        %s289 = smul.addr %s288, 128
        %s290 = scalar_lea.vmem [#allocation6], %s289
        // Predicated region
        $region45: #{tpu_custom_call.1} parent=39 // pred_check
          %p291 = pneg %p86
        $region46: #{tpu_custom_call.1} parent=39 // pred_check_branch
          %293 = sbr.rel (%p291) target = $region48
        $region47: #{tpu_custom_call.1} parent=39 // pred_region
          %294 = dma.done %s287, 2048
        $region48: #{tpu_custom_call.1} parent=39 // pred_fallthru
          _
        %s295 = sand.u32 %s25, 1
        %s296 = scalar_lea.sflag [#allocation7], %s295
        %s297 = sand.u32 %s141, 1
        %s298 = smul.addr %s297, 64
        %s299 = scalar_lea.vmem [#allocation8], %s298
        // Predicated region
        $region49: #{tpu_custom_call.1} parent=39 // pred_check
          %p300 = pneg %p154
        $region50: #{tpu_custom_call.1} parent=39 // pred_check_branch
          %302 = sbr.rel (%p300) target = $region52
        $region51: #{tpu_custom_call.1} parent=39 // pred_region
          %303 = dma.done %s296, 1024
        $region52: #{tpu_custom_call.1} parent=39 // pred_fallthru
          _
        %s304 = sand.u32 %s47, 1
        %s305 = scalar_lea.sflag [#allocation4], %s304
        %s306 = sand.u32 %s47, 1
        %s307 = smul.addr %s306, 64
        %s308 = scalar_lea.vmem [#allocation3], %s307
        %p309 = pneg %p60
        %p310 = pneg %p57
        %s311 = sand.u32 %s25, 1
        %s312 = scalar_lea.sflag [#allocation7], %s311
        %s313 = sand.u32 %s73, 1
        %s314 = smul.addr %s313, 128
        %s315 = scalar_lea.vmem [#allocation6], %s314
        %p316 = pneg %p86
        %p317 = pneg %p83
        %p318 = pneg %p107
        %p319 = pneg %p104
        %p320 = pneg %p128
        %p321 = pneg %p125
        %s322 = sand.u32 %s25, 1
        %s323 = scalar_lea.sflag [#allocation7], %s322
        %s324 = sand.u32 %s141, 1
        %s325 = smul.addr %s324, 64
        %s326 = scalar_lea.vmem [#allocation8], %s325
        %p327 = pneg %p154
        %p328 = pneg %p151
        %p329 = pneg %p180
        %p330 = pneg %p177
        %s331 = sand.u32 %s167, 1
        %s332 = scalar_lea.sflag [#allocation5], %s331
        %s333 = sand.u32 %s167, 1
        %s334 = smul.addr %s333, 64
        %s335 = scalar_lea.vmem [#allocation9], %s334
        %s336 = smul.u32 8, %s29
        %s337 = smul.u32 16, %s30
        %s338 = smul.u32 8, %s29
        %s339 = smul.u32 8, %s29
        %p340 = scmp.eq.s32.totalorder %s30, 0
        // Predicated region
        $region53: #{tpu_custom_call.1} parent=39 // pred_check
          %p341 = pneg %p340
        $region54: #{tpu_custom_call.1} parent=39 // pred_check_branch
          %343 = sbr.rel (%p341) target = $region56
        $region55: #{tpu_custom_call.1} parent=39 // pred_region
          %344 = vst [vmem:[#allocation2] sm:$0xff] 0.0
          %345 = vst [vmem:[#allocation2 + $0x8] sm:$0xff] 0.0
          %346 = vst [vmem:[#allocation2 + $0x10] sm:$0xff] 0.0
          %347 = vst [vmem:[#allocation2 + $0x18] sm:$0xff] 0.0
          %348 = vst [vmem:[#allocation2 + $0x20] sm:$0xff] 0.0
          %349 = vst [vmem:[#allocation2 + $0x28] sm:$0xff] 0.0
          %350 = vst [vmem:[#allocation2 + $0x30] sm:$0xff] 0.0
          %351 = vst [vmem:[#allocation2 + $0x38] sm:$0xff] 0.0
        $region56: #{tpu_custom_call.1} parent=39 // pred_fallthru
          _
        %v352 = vld [vmem:[#allocation2] sm:$0xff]
        %v353 = vld [vmem:[#allocation2 + $0x8] sm:$0xff]
        %v354 = vld [vmem:[#allocation2 + $0x10] sm:$0xff]
        %v355 = vld [vmem:[#allocation2 + $0x18] sm:$0xff]
        %v356 = vld [vmem:[#allocation2 + $0x20] sm:$0xff]
        %v357 = vld [vmem:[#allocation2 + $0x28] sm:$0xff]
        %v358 = vld [vmem:[#allocation2 + $0x30] sm:$0xff]
        %v359 = vld [vmem:[#allocation2 + $0x38] sm:$0xff]
        %v360 = vld [vmem:[%s281] sm:$0xff]
        %v361 = vld [vmem:[%s281 + $0x8] sm:$0xff]
        %v362 = vld [vmem:[%s281 + $0x10] sm:$0xff]
        %v363 = vld [vmem:[%s281 + $0x18] sm:$0xff]
        %v364 = vld [vmem:[%s281 + $0x20] sm:$0xff]
        %v365 = vld [vmem:[%s281 + $0x28] sm:$0xff]
        %v366 = vld [vmem:[%s281 + $0x30] sm:$0xff]
        %v367 = vld [vmem:[%s281 + $0x38] sm:$0xff]
        %v368 = vld [vmem:[%s290] sm:$0xff]
        %v369 = vld [vmem:[%s290 + $0x8] sm:$0xff]
        %v370 = vld [vmem:[%s290 + $0x10] sm:$0xff]
        %v371 = vld [vmem:[%s290 + $0x18] sm:$0xff]
        %v372 = vld [vmem:[%s290 + $0x20] sm:$0xff]
        %v373 = vld [vmem:[%s290 + $0x28] sm:$0xff]
        %v374 = vld [vmem:[%s290 + $0x30] sm:$0xff]
        %v375 = vld [vmem:[%s290 + $0x38] sm:$0xff]
        %v376 = vld [vmem:[%s290 + $0x40] sm:$0xff]
        %v377 = vld [vmem:[%s290 + $0x48] sm:$0xff]
        %v378 = vld [vmem:[%s290 + $0x50] sm:$0xff]
        %v379 = vld [vmem:[%s290 + $0x58] sm:$0xff]
        %v380 = vld [vmem:[%s290 + $0x60] sm:$0xff]
        %v381 = vld [vmem:[%s290 + $0x68] sm:$0xff]
        %v382 = vld [vmem:[%s290 + $0x70] sm:$0xff]
        %v383 = vld [vmem:[%s290 + $0x78] sm:$0xff]
        %384 = vmatprep.subr.mxu0 0.0
        %385 = vmatpush1.msra.mxu0 %v368
        %386 = vmatprep.subr.mxu0 0.0
        %387 = vmatpush1.msra.mxu0 %v369
        %388 = vmatprep.subr.mxu0 0.0
        %389 = vmatpush1.msra.mxu0 %v370
        %390 = vmatprep.subr.mxu0 0.0
        %391 = vmatpush1.msra.mxu0 %v371
        %392 = vmatprep.subr.mxu0 0.0
        %393 = vmatpush1.msra.mxu0 %v372
        %394 = vmatprep.subr.mxu0 0.0
        %395 = vmatpush1.msra.mxu0 %v373
        %396 = vmatprep.subr.mxu0 0.0
        %397 = vmatpush1.msra.mxu0 %v374
        %398 = vmatprep.subr.mxu0 0.0
        %399 = vmatpush1.msra.mxu0 %v375
        %400 = vmatprep.subr.mxu0 0.0
        %401 = vmatpush1.msra.mxu0 %v376
        %402 = vmatprep.subr.mxu0 0.0
        %403 = vmatpush1.msra.mxu0 %v377
        %404 = vmatprep.subr.mxu0 0.0
        %405 = vmatpush1.msra.mxu0 %v378
        %406 = vmatprep.subr.mxu0 0.0
        %407 = vmatpush1.msra.mxu0 %v379
        %408 = vmatprep.subr.mxu0 0.0
        %409 = vmatpush1.msra.mxu0 %v380
        %410 = vmatprep.subr.mxu0 0.0
        %411 = vmatpush1.msra.mxu0 %v381
        %412 = vmatprep.subr.mxu0 0.0
        %413 = vmatpush1.msra.mxu0 %v382
        %414 = vmatprep.subr.mxu0 0.0
        %415 = vmatpush1.msra.mxu0 %v383
        %416 = vmatprep.subr.mxu0 0.0
        %417 = vmatpush1.msra.mxu0 0.0
        %418 = vmatprep.subr.mxu0 0.0
        %419 = vmatpush1.msra.mxu0 0.0
        %420 = vmatprep.subr.mxu0 0.0
        %421 = vmatpush1.msra.mxu0 0.0
        %422 = vmatprep.subr.mxu0 0.0
        %423 = vmatpush1.msra.mxu0 0.0
        %424 = vmatprep.subr.mxu0 0.0
        %425 = vmatpush1.msra.mxu0 0.0
        %426 = vmatprep.subr.mxu0 0.0
        %427 = vmatpush1.msra.mxu0 0.0
        %428 = vmatprep.subr.mxu0 0.0
        %429 = vmatpush1.msra.mxu0 0.0
        %430 = vmatprep.subr.mxu0 0.0
        %431 = vmatpush1.msra.mxu0 0.0
        %432 = vmatprep.subr.mxu0 0.0
        %433 = vmatpush1.msra.mxu0 0.0
        %434 = vmatprep.subr.mxu0 0.0
        %435 = vmatpush1.msra.mxu0 0.0
        %436 = vmatprep.subr.mxu0 0.0
        %437 = vmatpush1.msra.mxu0 0.0
        %438 = vmatprep.subr.mxu0 0.0
        %439 = vmatpush1.msra.mxu0 0.0
        %440 = vmatprep.subr.mxu0 0.0
        %441 = vmatpush1.msra.mxu0 0.0
        %442 = vmatprep.subr.mxu0 0.0
        %443 = vmatpush1.msra.mxu0 0.0
        %444 = vmatprep.subr.mxu0 0.0
        %445 = vmatpush1.msra.mxu0 0.0
        %446 = vmatprep.subr.mxu0 0.0
        %447 = vmatpush1.msra.mxu0 0.0
        %448 = vmatprep.mubr.f32.mxu0 0.0
        %449 = vmatmul.mubr.f32.gmra.mrb[0].mxu0 %v360
        %v450 = vpop.f32.mrb[0].mxu0
        %v451 = vadd.f32 0.0, %v450
        %v452 = vpop.f32.mrb[0].mxu0
        %453 = vmatprep.mubr.f32.mxu0 0.0
        %454 = vmatmul.mubr.f32.gmra.mrb[0].mxu0 %v361
        %v455 = vpop.f32.mrb[0].mxu0
        %v456 = vadd.f32 0.0, %v455
        %v457 = vpop.f32.mrb[0].mxu0
        %458 = vmatprep.mubr.f32.mxu0 0.0
        %459 = vmatmul.mubr.f32.gmra.mrb[0].mxu0 %v362
        %v460 = vpop.f32.mrb[0].mxu0
        %v461 = vadd.f32 0.0, %v460
        %v462 = vpop.f32.mrb[0].mxu0
        %463 = vmatprep.mubr.f32.mxu0 0.0
        %464 = vmatmul.mubr.f32.gmra.mrb[0].mxu0 %v363
        %v465 = vpop.f32.mrb[0].mxu0
        %v466 = vadd.f32 0.0, %v465
        %v467 = vpop.f32.mrb[0].mxu0
        %468 = vmatprep.mubr.f32.mxu0 0.0
        %469 = vmatmul.mubr.f32.gmra.mrb[0].mxu0 %v364
        %v470 = vpop.f32.mrb[0].mxu0
        %v471 = vadd.f32 0.0, %v470
        %v472 = vpop.f32.mrb[0].mxu0
        %473 = vmatprep.mubr.f32.mxu0 0.0
        %474 = vmatmul.mubr.f32.gmra.mrb[0].mxu0 %v365
        %v475 = vpop.f32.mrb[0].mxu0
        %v476 = vadd.f32 0.0, %v475
        %v477 = vpop.f32.mrb[0].mxu0
        %478 = vmatprep.mubr.f32.mxu0 0.0
        %479 = vmatmul.mubr.f32.gmra.mrb[0].mxu0 %v366
        %v480 = vpop.f32.mrb[0].mxu0
        %v481 = vadd.f32 0.0, %v480
        %v482 = vpop.f32.mrb[0].mxu0
        %483 = vmatprep.mubr.f32.mxu0 0.0
        %484 = vmatmul.mubr.f32.gmra.mrb[0].mxu0 %v367
        %v485 = vpop.f32.mrb[0].mxu0
        %v486 = vadd.f32 0.0, %v485
        %v487 = vpop.f32.mrb[0].mxu0
        %488 = vdwg.mxu0
        %v489 = vadd.f32 %v352, %v451
        %v490 = vadd.f32 %v353, %v456
        %v491 = vadd.f32 %v354, %v461
        %v492 = vadd.f32 %v355, %v466
        %v493 = vadd.f32 %v356, %v471
        %v494 = vadd.f32 %v357, %v476
        %v495 = vadd.f32 %v358, %v481
        %v496 = vadd.f32 %v359, %v486
        %497 = vst [vmem:[#allocation2] sm:$0xff] %v489
        %498 = vst [vmem:[#allocation2 + $0x8] sm:$0xff] %v490
        %499 = vst [vmem:[#allocation2 + $0x10] sm:$0xff] %v491
        %500 = vst [vmem:[#allocation2 + $0x18] sm:$0xff] %v492
        %501 = vst [vmem:[#allocation2 + $0x20] sm:$0xff] %v493
        %502 = vst [vmem:[#allocation2 + $0x28] sm:$0xff] %v494
        %503 = vst [vmem:[#allocation2 + $0x30] sm:$0xff] %v495
        %504 = vst [vmem:[#allocation2 + $0x38] sm:$0xff] %v496
        %p505 = scmp.eq.s32.totalorder %s30, 1
        // Predicated region
        $region57: #{tpu_custom_call.1} parent=39 // pred_check
          %p506 = pneg %p505
        $region58: #{tpu_custom_call.1} parent=39 // pred_check_branch
          %508 = sbr.rel (%p506) target = $region60
        $region59: #{tpu_custom_call.1} parent=39 // pred_region
          %v509 = vld [vmem:[#allocation2] sm:$0xff]
          %v510 = vld [vmem:[#allocation2 + $0x8] sm:$0xff]
          %v511 = vld [vmem:[#allocation2 + $0x10] sm:$0xff]
          %v512 = vld [vmem:[#allocation2 + $0x18] sm:$0xff]
          %v513 = vld [vmem:[#allocation2 + $0x20] sm:$0xff]
          %v514 = vld [vmem:[#allocation2 + $0x28] sm:$0xff]
          %v515 = vld [vmem:[#allocation2 + $0x30] sm:$0xff]
          %v516 = vld [vmem:[#allocation2 + $0x38] sm:$0xff]
          %v517 = vld [vmem:[%s2] sm:$0x1]
          %v519 = vlaneseq
          %v520 = vshrl.u32 %v519, 7
          %v521 = vsub.s32 0, %v520
          %v522 = vrot.slane %v517, %v521
          %v524 = vmul.f32 %v509, %v522
          %v525 = vmul.f32 %v510, %v522
          %v526 = vmul.f32 %v511, %v522
          %v527 = vmul.f32 %v512, %v522
          %v528 = vmul.f32 %v513, %v522
          %v529 = vmul.f32 %v514, %v522
          %v530 = vmul.f32 %v515, %v522
          %v531 = vmul.f32 %v516, %v522
          %v532 = vld [vmem:[%s3] sm:$0x1]
          %v534 = vlaneseq
          %v535 = vshrl.u32 %v534, 7
          %v536 = vsub.s32 0, %v535
          %v537 = vrot.slane %v532, %v536
          %v539 = vadd.f32 %v524, %v537
          %v540 = vadd.f32 %v525, %v537
          %v541 = vadd.f32 %v526, %v537
          %v542 = vadd.f32 %v527, %v537
          %v543 = vadd.f32 %v528, %v537
          %v544 = vadd.f32 %v529, %v537
          %v545 = vadd.f32 %v530, %v537
          %v546 = vadd.f32 %v531, %v537
          %v547 = vld [vmem:[%s299] sm:$0xff]
          %v548 = vld [vmem:[%s299 + $0x8] sm:$0xff]
          %v549 = vld [vmem:[%s299 + $0x10] sm:$0xff]
          %v550 = vld [vmem:[%s299 + $0x18] sm:$0xff]
          %v551 = vld [vmem:[%s299 + $0x20] sm:$0xff]
          %v552 = vld [vmem:[%s299 + $0x28] sm:$0xff]
          %v553 = vld [vmem:[%s299 + $0x30] sm:$0xff]
          %v554 = vld [vmem:[%s299 + $0x38] sm:$0xff]
          %v555 = vadd.f32 %v539, %v547
          %v556 = vadd.f32 %v540, %v548
          %v557 = vadd.f32 %v541, %v549
          %v558 = vadd.f32 %v542, %v550
          %v559 = vadd.f32 %v543, %v551
          %v560 = vadd.f32 %v544, %v552
          %v561 = vadd.f32 %v545, %v553
          %v562 = vadd.f32 %v546, %v554
          %v563 = vmax.f32 %v555, 0.0
          %v564 = vmax.f32 %v556, 0.0
          %v565 = vmax.f32 %v557, 0.0
          %v566 = vmax.f32 %v558, 0.0
          %v567 = vmax.f32 %v559, 0.0
          %v568 = vmax.f32 %v560, 0.0
          %v569 = vmax.f32 %v561, 0.0
          %v570 = vmax.f32 %v562, 0.0
          %571 = vst [vmem:[%s335] sm:$0xff] %v563
          %572 = vst [vmem:[%s335 + $0x8] sm:$0xff] %v564
          %573 = vst [vmem:[%s335 + $0x10] sm:$0xff] %v565
          %574 = vst [vmem:[%s335 + $0x18] sm:$0xff] %v566
          %575 = vst [vmem:[%s335 + $0x20] sm:$0xff] %v567
          %576 = vst [vmem:[%s335 + $0x28] sm:$0xff] %v568
          %577 = vst [vmem:[%s335 + $0x30] sm:$0xff] %v569
          %578 = vst [vmem:[%s335 + $0x38] sm:$0xff] %v570
        $region60: #{tpu_custom_call.1} parent=39 // pred_fallthru
          _
        %s579 = sand.u32 %s167, 1
        %s580 = scalar_lea.sflag [#allocation5], %s579
        %s581 = sand.u32 %s167, 1
        %s582 = smul.addr %s581, 64
        %s583 = scalar_lea.vmem [#allocation9], %s582
        // Predicated region
        $region61: #{tpu_custom_call.1} parent=39 // pred_check
          %p584 = pneg %p177
        $region62: #{tpu_custom_call.1} parent=39 // pred_check_branch
          %586 = sbr.rel (%p584) target = $region64
        $region63: #{tpu_custom_call.1} parent=39 // pred_region
          %s587 = smul.u32 8, %s29
          %s589 = ssub.s32 1024, 1024
          %590 = vsyncadd %s580, %s589
          %s591 = smul.addr %s587, 128
          %s592 = scalar_lea.hbm %s5, %s591
          %s593 = sshll.u32 %s583, 4
          %s594 = int_to_ptr.vmem [resolvable:$true] %s593
          %599 = dma.vmem_to_hbm [thread:$0]  %s594, 1024, %s592, %s580, 128, 128, 8
        $region64: #{tpu_custom_call.1} parent=39 // pred_fallthru
          _
      $region40: #{tpu_custom_call.1} parent=5 // pred_fallthru
        _
      %p600 = scmp.le.s32.totalorder 2, %s20
      // Predicated region
      $region65: #{tpu_custom_call.1} parent=5 // pred_check
        %p601 = pneg %p600
      $region66: #{tpu_custom_call.1} parent=5 // pred_check_branch
        %603 = sbr.rel (%p601) target = $region68
      $region67: #{tpu_custom_call.1} parent=5 // pred_region
        %s604 = ssub.s32 %s20, 2
        // Predicated region
        $region69: #{tpu_custom_call.1} parent=67 // pred_check
          %p605 = pneg %p183
        $region70: #{tpu_custom_call.1} parent=67 // pred_check_branch
          %607 = sbr.rel (%p605) target = $region72
        $region71: #{tpu_custom_call.1} parent=67 // pred_region
          %s608 = sand.u32 %s168, 1
          %s609 = scalar_lea.sflag [#allocation5], %s608
          %s610 = sand.u32 %s168, 1
          %s611 = smul.addr %s610, 64
          %s612 = scalar_lea.vmem [#allocation9], %s611
          %613 = dma.done %s609, 1024
        $region72: #{tpu_custom_call.1} parent=67 // pred_fallthru
          _
      $region68: #{tpu_custom_call.1} parent=5 // pred_fallthru
        _
    $region6: #{tpu_custom_call.1} parent=1 // loop_footer
      %s24 = sadd.s32 1, %s20
    $region7: #{tpu_custom_call.1} parent=1 // loop_footer_branch
      %19 = sbr.rel target = $region3
    $region8: #{tpu_custom_call.1} parent=1 // loop_exit
      _
    %614 = vsyncpa [#allocation4], 1
    %s615 = scalar_lea.sflag [#allocation4], 1
    %616 = vsyncpa %s615, 1
    %617 = vsyncpa [#allocation7], 1
    %s618 = scalar_lea.sflag [#allocation7], 1
    %619 = vsyncpa %s618, 1
    %620 = vsyncpa [#allocation5], 1
    %s621 = scalar_lea.sflag [#allocation5], 1
    %622 = vsyncpa %s621, 1

</llo_original>
